<compile_context>
chip_gen: v7x
topology: tpu7x:2x2x1
jax: 0.10.0
libtpu: 0.0.40
codegen_flags: <defaults>
</compile_context>

<pallas_src>
import functools
import math

import jax
import jax.numpy as jnp
from jax.experimental import pallas as pl
from jax.experimental.pallas import tpu as pltpu

# ----- small synthetic config (module defaults scaled down) -----
B = 2          # batch
T = 8          # maxtokens (seq)
V = 20         # num_wordclass
F = 32         # nfeats
E = 64         # embed_size (nimgfeats, fc7 dim)
FH = FW = 4    # image feature spatial dims
S = FH * FW    # flattened spatial
K = 5          # conv kernel size
PAD = K - 1    # causal left pad
SQRT_HALF = math.sqrt(0.5)


def convcap_kernel(
    # inputs
    onehot_ref,                      # (B, T, V)
    imgsfc7a_ref,                    # (B, E+1)   (ones column appended)
    img_sf_ref,                      # (B, S, F)
    emb_w_ref,                       # (V, F)     emb0_w @ emb1_w + emb1_b
    imgproj_wa_ref,                  # (E+1, F)   bias folded as last row
    convres_w_ref,                   # (K*2F, 3F) conv taps + resproj on last tap
    attn_in_w_ref,                   # (F, F)
    attn_out_w_ref,                  # (F, F)     attention output scale folded
    cls_w_ref,                       # (F, V)     cls0_w @ cls1_w
    bias_ref,                        # (4, 3F)    [conv_b|resproj_b ; attn_in_b ; attn_out_b ; cls_b]
    # outputs
    logits_ref,                      # (B*T, V)
    attn_ref,                        # (B*T, S)
):
    f32 = jnp.float32
    dot = functools.partial(jnp.dot, preferred_element_type=f32)
    biases = bias_ref[...]                                           # (4, 3F)

    # --- word embedding (fused emb_0 @ emb_1, bias folded) ---
    onehot2 = onehot_ref[...].reshape(B * T, V)
    wordemb2 = dot(onehot2, emb_w_ref[...])                          # (B*T, F)
    wordemb = wordemb2.reshape(B, T, F)

    # --- image projection + ReLU (bias via ones column) ---
    yimg = jnp.maximum(dot(imgsfc7a_ref[...], imgproj_wa_ref[...]), 0.0)   # (B, F)

    # --- x = cat([wordemb, img], channel), built in registers ---
    xcat = jnp.concatenate(
        [wordemb, jnp.broadcast_to(yimg[:, None, :], (B, T, F))], axis=-1)  # (B,T,2F)

    # --- causal Conv1d (kernel K, left pad PAD) + residual projection: one im2col matmul ---
    xpad = jnp.concatenate([jnp.zeros((B, PAD, 2 * F), f32), xcat], axis=1)  # (B,T+PAD,2F)
    cols = jnp.concatenate([xpad[:, k:k + T, :] for k in range(K)], axis=-1)  # (B,T,K*2F)
    convres = dot(cols.reshape(B * T, K * 2 * F), convres_w_ref[...]) + biases[0:1, :]
    conv = convres[:, : 2 * F]                                       # (B*T, 2F)
    residual0 = convres[:, 2 * F:]                                   # (B*T, F)

    # --- GLU ---
    glu = conv[:, :F] * jax.nn.sigmoid(conv[:, F:2 * F])             # (B*T, F)

    # --- attention layer ---
    res_attn = glu
    xa = (dot(glu, attn_in_w_ref[...]) + biases[1:2, :F] + wordemb2) * SQRT_HALF
    xa3 = xa.reshape(B, T, F)
    img_sf = img_sf_ref[...]                                         # (B, S, F)
    scores = jnp.einsum('btf,bsf->bts', xa3, img_sf,
                        preferred_element_type=f32)                  # (B, T, S)
    # softmax over dim 0 of the (B*T, S) view (exact reproduction of the torch code)
    sc2 = scores.reshape(B * T, S)
    m = jnp.max(sc2, axis=0, keepdims=True)
    e = jnp.exp(sc2 - m)
    p2 = e * pl.reciprocal(jnp.sum(e, axis=0, keepdims=True), approx=True)
    attn_ref[...] = p2

    ctx = jnp.einsum('bts,bsf->btf', p2.reshape(B, T, S), img_sf,
                     preferred_element_type=f32)                     # (B, T, F)
    # (S * sqrt(1/S)) scale is folded into attn_out_w in the wrapper
    xo = (dot(ctx.reshape(B * T, F), attn_out_w_ref[...])
          + biases[2:3, :F] + res_attn) * SQRT_HALF

    # --- add conv-block residual ---
    x = (xo + residual0) * SQRT_HALF                                 # (B*T, F)

    # --- classifier (two layers fused at trace time) ---
    logits_ref[...] = dot(x, cls_w_ref[...]) + biases[3:4, :V]


def convcap_forward(onehot, imgsfc7, img_sf, params):
    """Wrapper: fuses params at trace time, calls the Pallas kernel.
    Returns (wordact (B,V,T), attn (B,T,S))."""
    (emb0_w, emb1_w, emb1_b, imgproj_w, imgproj_b, resproj_w, resproj_b,
     conv_w, conv_b, attn_in_w, attn_in_b, attn_out_w, attn_out_b,
     cls0_w, cls0_b, cls1_w, cls1_b) = params

    # --- trace-time algebraic fusions (exact in eval mode: dropout = identity) ---
    emb_w = emb0_w @ emb1_w + emb1_b                                  # (V, F)
    imgproj_wa = jnp.concatenate([imgproj_w, imgproj_b], axis=0)      # (E+1, F)
    imgsfc7_aug = jnp.concatenate(
        [imgsfc7, jnp.ones((B, 1), jnp.float32)], axis=1)             # (B, E+1)
    # im2col conv weight, residual projection appended on the unshifted (last) tap
    res_block = jnp.concatenate(
        [jnp.zeros(((K - 1) * 2 * F, F), jnp.float32), resproj_w], axis=0)
    convres_w = jnp.concatenate(
        [conv_w.reshape(K * 2 * F, 2 * F), res_block], axis=1)        # (K*2F, 3F)
    attn_out_ws = attn_out_w * (S * math.sqrt(1.0 / S))               # fold ctx scale
    cls_w = cls0_w @ cls1_w                                           # (F, V)
    cls_b = cls0_b @ cls1_w + cls1_b                                  # (1, V)

    pad_to = 3 * F
    def row(b):
        b = b.reshape(-1)
        return jnp.pad(b, (0, pad_to - b.shape[0]))
    bias_pack = jnp.stack([
        jnp.concatenate([conv_b[0], resproj_b[0]]),                   # (3F,)
        row(attn_in_b), row(attn_out_b), row(cls_b),
    ])                                                                # (4, 3F)

    operands = (onehot, imgsfc7_aug, img_sf, emb_w, imgproj_wa, convres_w,
                attn_in_w, attn_out_ws, cls_w, bias_pack)

    vmem_spec = pl.BlockSpec(memory_space=pltpu.MemorySpace.VMEM)
    logits2, attn2 = pl.pallas_call(
        convcap_kernel,
        out_shape=(
            jax.ShapeDtypeStruct((B * T, V), jnp.float32),
            jax.ShapeDtypeStruct((B * T, S), jnp.float32),
        ),
        in_specs=[vmem_spec] * len(operands),
        out_specs=(vmem_spec, vmem_spec),
    )(*operands)

    wordact = jnp.transpose(logits2.reshape(B, T, V), (0, 2, 1))      # (B, V, T)
    attn = attn2.reshape(B, T, S)
    return wordact, attn


def reference_forward(onehot, imgsfc7, img_sf, params):
    """Plain-JAX reference mirroring the PyTorch module (eval mode)."""
    (emb0_w, emb1_w, emb1_b, imgproj_w, imgproj_b, resproj_w, resproj_b,
     conv_w, conv_b, attn_in_w, attn_in_b, attn_out_w, attn_out_b,
     cls0_w, cls0_b, cls1_w, cls1_b) = params
    we0 = onehot @ emb0_w
    wordemb = we0 @ emb1_w + emb1_b[0]
    yimg = jax.nn.relu(imgsfc7 @ imgproj_w + imgproj_b[0])
    xcat = jnp.concatenate(
        [wordemb, jnp.broadcast_to(yimg[:, None, :], (B, T, F))], axis=-1)
    residual = xcat @ resproj_w + resproj_b[0]
    xpad = jnp.pad(xcat, ((0, 0), (PAD, 0), (0, 0)))
    conv = jnp.broadcast_to(conv_b[0], (B, T, 2 * F))
    for k in range(K):
        conv = conv + xpad[:, k:k + T, :] @ conv_w[k]
    glu = conv[..., :F] * jax.nn.sigmoid(conv[..., F:])
    res_attn = glu
    xa = (glu @ attn_in_w + attn_in_b[0] + wordemb) * SQRT_HALF
    scores = jnp.einsum('btf,bsf->bts', xa, img_sf)
    p = jax.nn.softmax(scores.reshape(B * T, S), axis=0).reshape(B, T, S)
    ctx = jnp.einsum('bts,bsf->btf', p, img_sf) * (S * math.sqrt(1.0 / S))
    xo = (ctx @ attn_out_w + attn_out_b[0] + res_attn) * SQRT_HALF
    x = (xo + residual) * SQRT_HALF
    h = x @ cls0_w + cls0_b[0]
    logits = h @ cls1_w + cls1_b[0]
    return jnp.transpose(logits, (0, 2, 1)), p


def make_params(key):
    ks = jax.random.split(key, 10)
    n = lambda k, shape, std: (std * jax.random.normal(k, shape)).astype(jnp.float32)
    z = lambda shape: jnp.zeros(shape, jnp.float32)
    d = 0.1  # dropout param (affects init std only)
    emb0_w = n(ks[0], (V, F), 0.1)
    emb1_w = n(ks[1], (F, F), math.sqrt((1 - d) / F))
    imgproj_w = n(ks[2], (E, F), math.sqrt((1 - d) / E))
    resproj_w = n(ks[3], (2 * F, F), math.sqrt((1 - d) / (2 * F)))
    conv_w = n(ks[4], (K, 2 * F, 2 * F), math.sqrt(4 * (1 - d) / (K * 2 * F)))
    attn_in_w = n(ks[5], (F, F), math.sqrt(1.0 / F))
    attn_out_w = n(ks[6], (F, F), math.sqrt(1.0 / F))
    cls0_w = n(ks[7], (F, F // 2), math.sqrt(1.0 / F))
    cls1_w = n(ks[8], (F // 2, V), math.sqrt((1 - d) / (F // 2)))
    return (emb0_w,
            emb1_w, z((1, F)),
            imgproj_w, z((1, F)),
            resproj_w, z((1, F)),
            conv_w, z((1, 2 * F)),
            attn_in_w, z((1, F)),
            attn_out_w, z((1, F)),
            cls0_w, z((1, F // 2)),
            cls1_w, z((1, V)))


if __name__ == "__main__":
    key = jax.random.PRNGKey(0)
    kp, kw, kf, ki = jax.random.split(key, 4)

    params = make_params(kp)

    # inputs (PyTorch-shaped), then converted to kernel layout (glue)
    wordclass = jax.random.randint(kw, (B, T), 0, V)                      # (B, T) int
    imgsfc7 = jax.random.normal(kf, (B, E), dtype=jnp.float32)            # (B, E)
    imgsfeats_nchw = jax.random.normal(ki, (B, F, FH, FW), dtype=jnp.float32)  # NCHW

    onehot = jax.nn.one_hot(wordclass, V, dtype=jnp.float32)              # (B, T, V)
    img_sf = jnp.transpose(imgsfeats_nchw.reshape(B, F, S), (0, 2, 1))    # (B, S, F)

    fwd = jax.jit(convcap_forward)
    wordact, attn = fwd(onehot, imgsfc7, img_sf, params)
    jax.block_until_ready((wordact, attn))

    ref_wordact, ref_attn = reference_forward(onehot, imgsfc7, img_sf, params)
    assert wordact.shape == (B, V, T) and attn.shape == (B, T, S)
    assert bool(jnp.allclose(wordact, ref_wordact, rtol=1e-2, atol=1e-2))
    assert bool(jnp.allclose(attn, ref_attn, rtol=1e-2, atol=1e-2))

    print("KERNEL_OK")
</pallas_src>

<mosaic_0001>
module attributes {stable_mosaic.version = 11 : i64} {
  func.func @convcap_kernel(%arg0: memref<2x8x20xf32, #tpu.memory_space<vmem>>, %arg1: memref<2x65xf32, #tpu.memory_space<vmem>>, %arg2: memref<2x16x32xf32, #tpu.memory_space<vmem>>, %arg3: memref<20x32xf32, #tpu.memory_space<vmem>>, %arg4: memref<65x32xf32, #tpu.memory_space<vmem>>, %arg5: memref<320x96xf32, #tpu.memory_space<vmem>>, %arg6: memref<32x32xf32, #tpu.memory_space<vmem>>, %arg7: memref<32x32xf32, #tpu.memory_space<vmem>>, %arg8: memref<32x20xf32, #tpu.memory_space<vmem>>, %arg9: memref<4x96xf32, #tpu.memory_space<vmem>>, %arg10: memref<16x20xf32, #tpu.memory_space<vmem>>, %arg11: memref<16x16xf32, #tpu.memory_space<vmem>>) attributes {dimension_semantics = [], scalar_prefetch = 0 : i64, scratch_operands = 0 : i64, tpu.core_type = #tpu.core_type<tc>} {
    %c0 = arith.constant 0 : index
    %c0_0 = arith.constant 0 : index
    %0 = vector.load %arg9[%c0, %c0_0] : memref<4x96xf32, #tpu.memory_space<vmem>>, vector<4x96xf32>
    %c0_1 = arith.constant 0 : index
    %c0_2 = arith.constant 0 : index
    %c0_3 = arith.constant 0 : index
    %1 = vector.load %arg0[%c0_1, %c0_2, %c0_3] : memref<2x8x20xf32, #tpu.memory_space<vmem>>, vector<2x8x20xf32>
    %2 = vector.shape_cast %1 : vector<2x8x20xf32> to vector<16x20xf32>
    %c0_4 = arith.constant 0 : index
    %c0_5 = arith.constant 0 : index
    %3 = vector.load %arg3[%c0_4, %c0_5] : memref<20x32xf32, #tpu.memory_space<vmem>>, vector<20x32xf32>
    %cst = arith.constant dense<0.000000e+00> : vector<16x32xf32>
    %4 = tpu.matmul %2, %3, %cst {dimension_numbers = #tpu.dot_dimension_numbers<[1], [0], [0], [1], [0, 0, 1, 1], [], []>} : vector<16x20xf32>, vector<20x32xf32>, vector<16x32xf32> -> vector<16x32xf32>
    %5 = vector.shape_cast %4 : vector<16x32xf32> to vector<2x8x32xf32>
    %c0_6 = arith.constant 0 : index
    %c0_7 = arith.constant 0 : index
    %6 = vector.load %arg1[%c0_6, %c0_7] : memref<2x65xf32, #tpu.memory_space<vmem>>, vector<2x65xf32>
    %c0_8 = arith.constant 0 : index
    %c0_9 = arith.constant 0 : index
    %7 = vector.load %arg4[%c0_8, %c0_9] : memref<65x32xf32, #tpu.memory_space<vmem>>, vector<65x32xf32>
    %cst_10 = arith.constant dense<0.000000e+00> : vector<2x32xf32>
    %8 = tpu.matmul %6, %7, %cst_10 {dimension_numbers = #tpu.dot_dimension_numbers<[1], [0], [0], [1], [0, 0, 1, 1], [], []>} : vector<2x65xf32>, vector<65x32xf32>, vector<2x32xf32> -> vector<2x32xf32>
    %cst_11 = arith.constant 0.000000e+00 : f32
    %9 = vector.broadcast %cst_11 : f32 to vector<2x32xf32>
    %10 = arith.maximumf %8, %9 : vector<2x32xf32>
    %11 = vector.shape_cast %10 : vector<2x32xf32> to vector<2x1x32xf32>
    %12 = vector.shape_cast %11 : vector<2x1x32xf32> to vector<2x1x32xf32>
    %13 = vector.broadcast %12 : vector<2x1x32xf32> to vector<2x8x32xf32>
    %14 = tpu.concatenate %5, %13 in 2 : vector<2x8x32xf32>, vector<2x8x32xf32> -> vector<2x8x64xf32>
    %cst_12 = arith.constant 0.000000e+00 : f32
    %15 = vector.broadcast %cst_12 : f32 to vector<2x4x64xf32>
    %16 = tpu.concatenate %15, %14 in 1 : vector<2x4x64xf32>, vector<2x8x64xf32> -> vector<2x12x64xf32>
    %17 = vector.extract_strided_slice %16 {offsets = [0, 0, 0], sizes = [2, 8, 64], strides = [1, 1, 1]} : vector<2x12x64xf32> to vector<2x8x64xf32>
    %18 = vector.extract_strided_slice %16 {offsets = [0, 1, 0], sizes = [2, 8, 64], strides = [1, 1, 1]} : vector<2x12x64xf32> to vector<2x8x64xf32>
    %19 = vector.extract_strided_slice %16 {offsets = [0, 2, 0], sizes = [2, 8, 64], strides = [1, 1, 1]} : vector<2x12x64xf32> to vector<2x8x64xf32>
    %20 = vector.extract_strided_slice %16 {offsets = [0, 3, 0], sizes = [2, 8, 64], strides = [1, 1, 1]} : vector<2x12x64xf32> to vector<2x8x64xf32>
    %21 = vector.extract_strided_slice %16 {offsets = [0, 4, 0], sizes = [2, 8, 64], strides = [1, 1, 1]} : vector<2x12x64xf32> to vector<2x8x64xf32>
    %22 = tpu.concatenate %17, %18, %19, %20, %21 in 2 : vector<2x8x64xf32>, vector<2x8x64xf32>, vector<2x8x64xf32>, vector<2x8x64xf32>, vector<2x8x64xf32> -> vector<2x8x320xf32>
    %23 = vector.shape_cast %22 : vector<2x8x320xf32> to vector<16x320xf32>
    %c0_13 = arith.constant 0 : index
    %c0_14 = arith.constant 0 : index
    %24 = vector.load %arg5[%c0_13, %c0_14] : memref<320x96xf32, #tpu.memory_space<vmem>>, vector<320x96xf32>
    %cst_15 = arith.constant dense<0.000000e+00> : vector<16x96xf32>
    %25 = tpu.matmul %23, %24, %cst_15 {dimension_numbers = #tpu.dot_dimension_numbers<[1], [0], [0], [1], [0, 0, 1, 1], [], []>} : vector<16x320xf32>, vector<320x96xf32>, vector<16x96xf32> -> vector<16x96xf32>
    %26 = vector.extract_strided_slice %0 {offsets = [0, 0], sizes = [1, 96], strides = [1, 1]} : vector<4x96xf32> to vector<1x96xf32>
    %27 = vector.broadcast %26 : vector<1x96xf32> to vector<16x96xf32>
    %28 = arith.addf %25, %27 : vector<16x96xf32>
    %29 = vector.extract_strided_slice %28 {offsets = [0, 0], sizes = [16, 64], strides = [1, 1]} : vector<16x96xf32> to vector<16x64xf32>
    %30 = vector.extract_strided_slice %28 {offsets = [0, 64], sizes = [16, 32], strides = [1, 1]} : vector<16x96xf32> to vector<16x32xf32>
    %31 = vector.extract_strided_slice %29 {offsets = [0, 0], sizes = [16, 32], strides = [1, 1]} : vector<16x64xf32> to vector<16x32xf32>
    %32 = vector.extract_strided_slice %29 {offsets = [0, 32], sizes = [16, 32], strides = [1, 1]} : vector<16x64xf32> to vector<16x32xf32>
    %33 = arith.negf %32 : vector<16x32xf32>
    %34 = math.exp %33 : vector<16x32xf32>
    %cst_16 = arith.constant 1.000000e+00 : f32
    %35 = vector.broadcast %cst_16 : f32 to vector<16x32xf32>
    %36 = arith.addf %35, %34 : vector<16x32xf32>
    %37 = arith.divf %35, %36 : vector<16x32xf32>
    %38 = arith.mulf %31, %37 : vector<16x32xf32>
    %c0_17 = arith.constant 0 : index
    %c0_18 = arith.constant 0 : index
    %39 = vector.load %arg6[%c0_17, %c0_18] : memref<32x32xf32, #tpu.memory_space<vmem>>, vector<32x32xf32>
    %cst_19 = arith.constant dense<0.000000e+00> : vector<16x32xf32>
    %40 = tpu.matmul %38, %39, %cst_19 {dimension_numbers = #tpu.dot_dimension_numbers<[1], [0], [0], [1], [0, 0, 1, 1], [], []>} : vector<16x32xf32>, vector<32x32xf32>, vector<16x32xf32> -> vector<16x32xf32>
    %41 = vector.extract_strided_slice %0 {offsets = [1, 0], sizes = [1, 32], strides = [1, 1]} : vector<4x96xf32> to vector<1x32xf32>
    %42 = vector.broadcast %41 : vector<1x32xf32> to vector<16x32xf32>
    %43 = arith.addf %40, %42 : vector<16x32xf32>
    %44 = arith.addf %43, %4 : vector<16x32xf32>
    %cst_20 = arith.constant 0.707106769 : f32
    %45 = vector.broadcast %cst_20 : f32 to vector<16x32xf32>
    %46 = arith.mulf %44, %45 : vector<16x32xf32>
    %47 = vector.shape_cast %46 : vector<16x32xf32> to vector<2x8x32xf32>
    %c0_21 = arith.constant 0 : index
    %c0_22 = arith.constant 0 : index
    %c0_23 = arith.constant 0 : index
    %48 = vector.load %arg2[%c0_21, %c0_22, %c0_23] : memref<2x16x32xf32, #tpu.memory_space<vmem>>, vector<2x16x32xf32>
    "tpu.trace_start"() <{level = 10 : i32, message = "btf,bsf->bts"}> : () -> ()
    %cst_24 = arith.constant dense<0.000000e+00> : vector<2x8x16xf32>
    %49 = tpu.matmul %47, %48, %cst_24 {dimension_numbers = #tpu.dot_dimension_numbers<[2], [2], [1], [1], [0, 0, 0, 1, 1, 1], [0], [0]>} : vector<2x8x32xf32>, vector<2x16x32xf32>, vector<2x8x16xf32> -> vector<2x8x16xf32>
    "tpu.trace_stop"() : () -> ()
    %50 = vector.shape_cast %49 : vector<2x8x16xf32> to vector<16x16xf32>
    %cst_25 = arith.constant dense<0xFF800000> : vector<16xf32>
    %51 = vector.multi_reduction <maximumf>, %50, %cst_25 [0] : vector<16x16xf32> to vector<16xf32>
    %52 = vector.shape_cast %51 : vector<16xf32> to vector<1x16xf32>
    %53 = vector.broadcast %52 : vector<1x16xf32> to vector<16x16xf32>
    %54 = arith.subf %50, %53 : vector<16x16xf32>
    %55 = math.exp %54 : vector<16x16xf32>
    %cst_26 = arith.constant dense<0.000000e+00> : vector<16xf32>
    %56 = vector.multi_reduction <add>, %55, %cst_26 [0] : vector<16x16xf32> to vector<16xf32>
    %57 = vector.shape_cast %56 : vector<16xf32> to vector<1x16xf32>
    %58 = tpu.reciprocal %57 {approx = true} : vector<1x16xf32> -> vector<1x16xf32>
    %59 = vector.broadcast %58 : vector<1x16xf32> to vector<16x16xf32>
    %60 = arith.mulf %55, %59 : vector<16x16xf32>
    %c0_27 = arith.constant 0 : index
    %c0_28 = arith.constant 0 : index
    %61 = vector.load %arg11[%c0_27, %c0_28] : memref<16x16xf32, #tpu.memory_space<vmem>>, vector<16x16xf32>
    tpu.vector_store %arg11[%c0_27, %c0_28], %60 {strides = array<i32>} : memref<16x16xf32, #tpu.memory_space<vmem>>, vector<16x16xf32>,
    %62 = vector.shape_cast %60 : vector<16x16xf32> to vector<2x8x16xf32>
    "tpu.trace_start"() <{level = 10 : i32, message = "bts,bsf->btf"}> : () -> ()
    %cst_29 = arith.constant dense<0.000000e+00> : vector<2x8x32xf32>
    %63 = tpu.matmul %62, %48, %cst_29 {dimension_numbers = #tpu.dot_dimension_numbers<[2], [1], [1], [2], [0, 0, 0, 1, 1, 2], [0], [0]>} : vector<2x8x16xf32>, vector<2x16x32xf32>, vector<2x8x32xf32> -> vector<2x8x32xf32>
    "tpu.trace_stop"() : () -> ()
    %64 = vector.shape_cast %63 : vector<2x8x32xf32> to vector<16x32xf32>
    %c0_30 = arith.constant 0 : index
    %c0_31 = arith.constant 0 : index
    %65 = vector.load %arg7[%c0_30, %c0_31] : memref<32x32xf32, #tpu.memory_space<vmem>>, vector<32x32xf32>
    %cst_32 = arith.constant dense<0.000000e+00> : vector<16x32xf32>
    %66 = tpu.matmul %64, %65, %cst_32 {dimension_numbers = #tpu.dot_dimension_numbers<[1], [0], [0], [1], [0, 0, 1, 1], [], []>} : vector<16x32xf32>, vector<32x32xf32>, vector<16x32xf32> -> vector<16x32xf32>
    %67 = vector.extract_strided_slice %0 {offsets = [2, 0], sizes = [1, 32], strides = [1, 1]} : vector<4x96xf32> to vector<1x32xf32>
    %68 = vector.broadcast %67 : vector<1x32xf32> to vector<16x32xf32>
    %69 = arith.addf %66, %68 : vector<16x32xf32>
    %70 = arith.addf %69, %38 : vector<16x32xf32>
    %cst_33 = arith.constant 0.707106769 : f32
    %71 = vector.broadcast %cst_33 : f32 to vector<16x32xf32>
    %72 = arith.mulf %70, %71 : vector<16x32xf32>
    %73 = arith.addf %72, %30 : vector<16x32xf32>
    %cst_34 = arith.constant 0.707106769 : f32
    %74 = vector.broadcast %cst_34 : f32 to vector<16x32xf32>
    %75 = arith.mulf %73, %74 : vector<16x32xf32>
    %c0_35 = arith.constant 0 : index
    %c0_36 = arith.constant 0 : index
    %76 = vector.load %arg8[%c0_35, %c0_36] : memref<32x20xf32, #tpu.memory_space<vmem>>, vector<32x20xf32>
    %cst_37 = arith.constant dense<0.000000e+00> : vector<16x20xf32>
    %77 = tpu.matmul %75, %76, %cst_37 {dimension_numbers = #tpu.dot_dimension_numbers<[1], [0], [0], [1], [0, 0, 1, 1], [], []>} : vector<16x32xf32>, vector<32x20xf32>, vector<16x20xf32> -> vector<16x20xf32>
    %78 = vector.extract_strided_slice %0 {offsets = [3, 0], sizes = [1, 20], strides = [1, 1]} : vector<4x96xf32> to vector<1x20xf32>
    %79 = vector.broadcast %78 : vector<1x20xf32> to vector<16x20xf32>
    %80 = arith.addf %77, %79 : vector<16x20xf32>
    %c0_38 = arith.constant 0 : index
    %c0_39 = arith.constant 0 : index
    %81 = vector.load %arg10[%c0_38, %c0_39] : memref<16x20xf32, #tpu.memory_space<vmem>>, vector<16x20xf32>
    tpu.vector_store %arg10[%c0_38, %c0_39], %80 {strides = array<i32>} : memref<16x20xf32, #tpu.memory_space<vmem>>, vector<16x20xf32>,
    return
  }
}

</mosaic_0001>

<llo_original>
// kernel: convcap_forward.1
$region0: #{convcap_forward.1}
  #allocation0 [shape = 'u32[]', space=smem, size = 0x4, offset = 0x4, fixed_abs, tag = 'smem constant byte address 0x4 - core index']
  #allocation1 [shape = 'u32[144,128]{1,0:T(1,128)}', space=vmem, size = 0x12000, scoped, tag = 'internal scratch']
  %s0 = inlined_call_operand.vmem [shape: f32[2,8,20], index: 0, kind: input, shape index: {}]
  %s1 = inlined_call_operand.vmem [shape: f32[2,65], index: 1, kind: input, shape index: {}]
  %s2 = inlined_call_operand.vmem [shape: f32[2,16,32], index: 2, kind: input, shape index: {}]
  %s3 = inlined_call_operand.vmem [shape: f32[20,32], index: 3, kind: input, shape index: {}]
  %s4 = inlined_call_operand.vmem [shape: f32[65,32], index: 4, kind: input, shape index: {}]
  %s5 = inlined_call_operand.vmem [shape: f32[320,96], index: 5, kind: input, shape index: {}]
  %s6 = inlined_call_operand.vmem [shape: f32[32,32], index: 6, kind: input, shape index: {}]
  %s7 = inlined_call_operand.vmem [shape: f32[32,32], index: 7, kind: input, shape index: {}]
  %s8 = inlined_call_operand.vmem [shape: f32[32,20], index: 8, kind: input, shape index: {}]
  %s9 = inlined_call_operand.vmem [shape: f32[4,96], index: 9, kind: input, shape index: {}]
  %s10 = inlined_call_operand.hbm [shape: f32[16,20], index: 10, kind: output, shape index: {0}]
  %s11 = inlined_call_operand.hbm [shape: f32[16,16], index: 11, kind: output, shape index: {1}]
  %12 = xla_tuple %s10, %s11
  %s13 = sld [smem:[#allocation0]]
  $region58: #{convcap_forward.1} parent=0
    _
  %s15 = ssub.s32 1, %s13
  %s16 = scalar_select 0, %s15, %s13
  $region1: #{convcap_forward.1} parent=0
    #allocation2 [shape = 'u8[8192]{0}', space=vmem, size = 0x2000, scoped, tag = 'output window, operand 0, single buffered']
    #allocation3 [shape = 's32[1]{0}', space=sflag, size = 0x4, scoped, tag = 'scoped memory for convcap_forward.1']
    #allocation4 [shape = 'u8[8192]{0}', space=vmem, size = 0x2000, scoped, tag = 'output window, operand 1, single buffered']
    #allocation5 [shape = 's32[1]{0}', space=sflag, size = 0x4, scoped, tag = 'scoped memory for convcap_forward.1']
    %17 = vsyncpa [#allocation3], 0
    %18 = vsyncpa [#allocation5], 0
    // Predicated region
    $region2: #{convcap_forward.1} parent=1 // pred_check
      _
    $region3: #{convcap_forward.1} parent=1 // pred_check_branch
      %20 = sbr.rel (0) target = $region5
    $region4: #{convcap_forward.1} parent=1 // pred_region
      _
    $region5: #{convcap_forward.1} parent=1 // pred_fallthru
      _
    // Predicated region
    $region6: #{convcap_forward.1} parent=1 // pred_check
      _
    $region7: #{convcap_forward.1} parent=1 // pred_check_branch
      %22 = sbr.rel (0) target = $region9
    $region8: #{convcap_forward.1} parent=1 // pred_region
      _
    $region9: #{convcap_forward.1} parent=1 // pred_fallthru
      _
    // Predicated region
    $region10: #{convcap_forward.1} parent=1 // pred_check
      _
    $region11: #{convcap_forward.1} parent=1 // pred_check_branch
      %24 = sbr.rel (0) target = $region13
    $region12: #{convcap_forward.1} parent=1 // pred_region
      _
    $region13: #{convcap_forward.1} parent=1 // pred_fallthru
      _
    // Predicated region
    $region14: #{convcap_forward.1} parent=1 // pred_check
      _
    $region15: #{convcap_forward.1} parent=1 // pred_check_branch
      %26 = sbr.rel (0) target = $region17
    $region16: #{convcap_forward.1} parent=1 // pred_region
      _
    $region17: #{convcap_forward.1} parent=1 // pred_fallthru
      _
    // Predicated region
    $region18: #{convcap_forward.1} parent=1 // pred_check
      _
    $region19: #{convcap_forward.1} parent=1 // pred_check_branch
      %28 = sbr.rel (0) target = $region21
    $region20: #{convcap_forward.1} parent=1 // pred_region
      _
    $region21: #{convcap_forward.1} parent=1 // pred_fallthru
      _
    // Predicated region
    $region22: #{convcap_forward.1} parent=1 // pred_check
      _
    $region23: #{convcap_forward.1} parent=1 // pred_check_branch
      %30 = sbr.rel (0) target = $region25
    $region24: #{convcap_forward.1} parent=1 // pred_region
      _
    $region25: #{convcap_forward.1} parent=1 // pred_fallthru
      _
    // Predicated region
    $region26: #{convcap_forward.1} parent=1 // pred_check
      _
    $region27: #{convcap_forward.1} parent=1 // pred_check_branch
      %32 = sbr.rel (0) target = $region29
    $region28: #{convcap_forward.1} parent=1 // pred_region
      _
    $region29: #{convcap_forward.1} parent=1 // pred_fallthru
      _
    // Predicated region
    $region30: #{convcap_forward.1} parent=1 // pred_check
      _
    $region31: #{convcap_forward.1} parent=1 // pred_check_branch
      %34 = sbr.rel (0) target = $region33
    $region32: #{convcap_forward.1} parent=1 // pred_region
      _
    $region33: #{convcap_forward.1} parent=1 // pred_fallthru
      _
    // Predicated region
    $region34: #{convcap_forward.1} parent=1 // pred_check
      _
    $region35: #{convcap_forward.1} parent=1 // pred_check_branch
      %36 = sbr.rel (0) target = $region37
    $region36: #{convcap_forward.1} parent=1 // pred_region
      _
    $region37: #{convcap_forward.1} parent=1 // pred_fallthru
      _
    // Predicated region
    $region38: #{convcap_forward.1} parent=1 // pred_check
      _
    $region39: #{convcap_forward.1} parent=1 // pred_check_branch
      %38 = sbr.rel (0) target = $region41
    $region40: #{convcap_forward.1} parent=1 // pred_region
      _
    $region41: #{convcap_forward.1} parent=1 // pred_fallthru
      _
    %v39 = vld [vmem:[%s9] sm:$0xf]
    %v40 = vld [vmem:[%s0] sm:$0xff]
    %v41 = vld [vmem:[%s0 + $0x8] sm:$0xff]
    %v42 = vld [vmem:[%s3] sm:$0xff]
    %v43 = vld [vmem:[%s3 + $0x8] sm:$0xff]
    %v44 = vld [vmem:[%s3 + $0x10] sm:$0xf]
    %vm45 = vcmask 162816
    %v47 = vsel %vm45, %v40, 0
    %v50 = vsel %vm45, %v41, 0
    %vm52 = vcmask 1043456
    %v54 = vsel %vm52, %v44, 0
    %56 = vmatprep.subr.mxu0 0.0
    %57 = vmatpush1.msra.mxu0 %v42
    %58 = vmatprep.subr.mxu0 0.0
    %59 = vmatpush1.msra.mxu0 %v43
    %60 = vmatprep.subr.mxu0 0.0
    %61 = vmatpush1.msra.mxu0 %v54
    %62 = vmatprep.subr.mxu0 0.0
    %63 = vmatpush1.msra.mxu0 0.0
    %64 = vmatprep.subr.mxu0 0.0
    %65 = vmatpush1.msra.mxu0 0.0
    %66 = vmatprep.subr.mxu0 0.0
    %67 = vmatpush1.msra.mxu0 0.0
    %68 = vmatprep.subr.mxu0 0.0
    %69 = vmatpush1.msra.mxu0 0.0
    %70 = vmatprep.subr.mxu0 0.0
    %71 = vmatpush1.msra.mxu0 0.0
    %72 = vmatprep.subr.mxu0 0.0
    %73 = vmatpush1.msra.mxu0 0.0
    %74 = vmatprep.subr.mxu0 0.0
    %75 = vmatpush1.msra.mxu0 0.0
    %76 = vmatprep.subr.mxu0 0.0
    %77 = vmatpush1.msra.mxu0 0.0
    %78 = vmatprep.subr.mxu0 0.0
    %79 = vmatpush1.msra.mxu0 0.0
    %80 = vmatprep.subr.mxu0 0.0
    %81 = vmatpush1.msra.mxu0 0.0
    %82 = vmatprep.subr.mxu0 0.0
    %83 = vmatpush1.msra.mxu0 0.0
    %84 = vmatprep.subr.mxu0 0.0
    %85 = vmatpush1.msra.mxu0 0.0
    %86 = vmatprep.subr.mxu0 0.0
    %87 = vmatpush1.msra.mxu0 0.0
    %88 = vmatprep.subr.mxu0 0.0
    %89 = vmatpush1.msra.mxu0 0.0
    %90 = vmatprep.subr.mxu0 0.0
    %91 = vmatpush1.msra.mxu0 0.0
    %92 = vmatprep.subr.mxu0 0.0
    %93 = vmatpush1.msra.mxu0 0.0
    %94 = vmatprep.subr.mxu0 0.0
    %95 = vmatpush1.msra.mxu0 0.0
    %96 = vmatprep.subr.mxu0 0.0
    %97 = vmatpush1.msra.mxu0 0.0
    %98 = vmatprep.subr.mxu0 0.0
    %99 = vmatpush1.msra.mxu0 0.0
    %100 = vmatprep.subr.mxu0 0.0
    %101 = vmatpush1.msra.mxu0 0.0
    %102 = vmatprep.subr.mxu0 0.0
    %103 = vmatpush1.msra.mxu0 0.0
    %104 = vmatprep.subr.mxu0 0.0
    %105 = vmatpush1.msra.mxu0 0.0
    %106 = vmatprep.subr.mxu0 0.0
    %107 = vmatpush1.msra.mxu0 0.0
    %108 = vmatprep.subr.mxu0 0.0
    %109 = vmatpush1.msra.mxu0 0.0
    %110 = vmatprep.subr.mxu0 0.0
    %111 = vmatpush1.msra.mxu0 0.0
    %112 = vmatprep.subr.mxu0 0.0
    %113 = vmatpush1.msra.mxu0 0.0
    %114 = vmatprep.subr.mxu0 0.0
    %115 = vmatpush1.msra.mxu0 0.0
    %116 = vmatprep.subr.mxu0 0.0
    %117 = vmatpush1.msra.mxu0 0.0
    %118 = vmatprep.subr.mxu0 0.0
    %119 = vmatpush1.msra.mxu0 0.0
    %120 = vmatprep.mubr.f32.mxu0 0.0
    %121 = vmatmul.mubr.f32.gmra.mrb[0].mxu0 %v47
    %v122 = vpop.f32.mrb[0].mxu0
    %v123 = vadd.f32 0.0, %v122
    %v124 = vpop.f32.mrb[0].mxu0
    %125 = vmatprep.mubr.f32.mxu0 0.0
    %126 = vmatmul.mubr.f32.gmra.mrb[0].mxu0 %v50
    %v127 = vpop.f32.mrb[0].mxu0
    %v128 = vadd.f32 0.0, %v127
    %v129 = vpop.f32.mrb[0].mxu0
    %130 = vdwg.mxu0
    %v131 = vld [vmem:[%s1] sm:$0x3]
    %v132 = vld [vmem:[%s4] sm:$0xff]
    %v133 = vld [vmem:[%s4 + $0x8] sm:$0xff]
    %v134 = vld [vmem:[%s4 + $0x10] sm:$0xff]
    %v135 = vld [vmem:[%s4 + $0x18] sm:$0xff]
    %v136 = vld [vmem:[%s4 + $0x20] sm:$0xff]
    %v137 = vld [vmem:[%s4 + $0x28] sm:$0xff]
    %v138 = vld [vmem:[%s4 + $0x30] sm:$0xff]
    %v139 = vld [vmem:[%s4 + $0x38] sm:$0xff]
    %v140 = vld [vmem:[%s4 + $0x40] sm:$0x1]
    %vm141 = vcmask 531456
    %v143 = vsel %vm141, %v131, 0
    %vm145 = vcmask 1040384
    %v147 = vsel %vm145, %v140, 0
    %149 = vmatprep.subr.mxu0 0.0
    %150 = vmatpush1.msra.mxu0 %v132
    %151 = vmatprep.subr.mxu0 0.0
    %152 = vmatpush1.msra.mxu0 %v133
    %153 = vmatprep.subr.mxu0 0.0
    %154 = vmatpush1.msra.mxu0 %v134
    %155 = vmatprep.subr.mxu0 0.0
    %156 = vmatpush1.msra.mxu0 %v135
    %157 = vmatprep.subr.mxu0 0.0
    %158 = vmatpush1.msra.mxu0 %v136
    %159 = vmatprep.subr.mxu0 0.0
    %160 = vmatpush1.msra.mxu0 %v137
    %161 = vmatprep.subr.mxu0 0.0
    %162 = vmatpush1.msra.mxu0 %v138
    %163 = vmatprep.subr.mxu0 0.0
    %164 = vmatpush1.msra.mxu0 %v139
    %165 = vmatprep.subr.mxu0 0.0
    %166 = vmatpush1.msra.mxu0 %v147
    %167 = vmatprep.subr.mxu0 0.0
    %168 = vmatpush1.msra.mxu0 0.0
    %169 = vmatprep.subr.mxu0 0.0
    %170 = vmatpush1.msra.mxu0 0.0
    %171 = vmatprep.subr.mxu0 0.0
    %172 = vmatpush1.msra.mxu0 0.0
    %173 = vmatprep.subr.mxu0 0.0
    %174 = vmatpush1.msra.mxu0 0.0
    %175 = vmatprep.subr.mxu0 0.0
    %176 = vmatpush1.msra.mxu0 0.0
    %177 = vmatprep.subr.mxu0 0.0
    %178 = vmatpush1.msra.mxu0 0.0
    %179 = vmatprep.subr.mxu0 0.0
    %180 = vmatpush1.msra.mxu0 0.0
    %181 = vmatprep.subr.mxu0 0.0
    %182 = vmatpush1.msra.mxu0 0.0
    %183 = vmatprep.subr.mxu0 0.0
    %184 = vmatpush1.msra.mxu0 0.0
    %185 = vmatprep.subr.mxu0 0.0
    %186 = vmatpush1.msra.mxu0 0.0
    %187 = vmatprep.subr.mxu0 0.0
    %188 = vmatpush1.msra.mxu0 0.0
    %189 = vmatprep.subr.mxu0 0.0
    %190 = vmatpush1.msra.mxu0 0.0
    %191 = vmatprep.subr.mxu0 0.0
    %192 = vmatpush1.msra.mxu0 0.0
    %193 = vmatprep.subr.mxu0 0.0
    %194 = vmatpush1.msra.mxu0 0.0
    %195 = vmatprep.subr.mxu0 0.0
    %196 = vmatpush1.msra.mxu0 0.0
    %197 = vmatprep.subr.mxu0 0.0
    %198 = vmatpush1.msra.mxu0 0.0
    %199 = vmatprep.subr.mxu0 0.0
    %200 = vmatpush1.msra.mxu0 0.0
    %201 = vmatprep.subr.mxu0 0.0
    %202 = vmatpush1.msra.mxu0 0.0
    %203 = vmatprep.subr.mxu0 0.0
    %204 = vmatpush1.msra.mxu0 0.0
    %205 = vmatprep.subr.mxu0 0.0
    %206 = vmatpush1.msra.mxu0 0.0
    %207 = vmatprep.subr.mxu0 0.0
    %208 = vmatpush1.msra.mxu0 0.0
    %209 = vmatprep.subr.mxu0 0.0
    %210 = vmatpush1.msra.mxu0 0.0
    %211 = vmatprep.subr.mxu0 0.0
    %212 = vmatpush1.msra.mxu0 0.0
    %213 = vmatprep.mubr.f32.mxu0 0.0
    %214 = vmatmul.mubr.f32.gmra.mrb[0].mxu0 %v143
    %v215 = vpop.f32.mrb[0].mxu0
    %v216 = vadd.f32 0.0, %v215
    %v217 = vpop.f32.mrb[0].mxu0
    %218 = vdwg.mxu0
    %v219 = vmax.f32 %v216, 0.0
    %v222 = vunpack.c.l.s4 1966171168
    %v223 = vunpack.c.0.s8 %v222
    %v224 = vlaneseq
    %v225 = vshrl.u32 %v224, 7
    %v226 = vsub.s32 %v223, %v225
    %v227 = vrot.slane %v219, %v226
    %v228 = vcombine.high %v227, %v227
    %v230 = vunpack.c.l.s4 1966171168
    %v231 = vunpack.c.0.s8 %v230
    %v232 = vlaneseq
    %v233 = vshrl.u32 %v232, 7
    %v234 = vsub.s32 %v231, %v233
    %v235 = vrot.slane %v227, %v234
    %v237 = vunpack.c.l.s4 1966171168
    %v238 = vunpack.c.0.s8 %v237
    %v239 = vlaneseq
    %v240 = vshrl.u32 %v239, 7
    %v241 = vsub.s32 %v238, %v240
    %v242 = vrot.slane %v228, %v241
    %v243 = vlaneseq
    %v244 = vshrl.u32 %v243, 7
    %v245 = vsub.s32 0, %v244
    %v246 = vrot.slane %v235, %v245
    %v247 = vlaneseq
    %v248 = vshrl.u32 %v247, 7
    %v249 = vsub.s32 0, %v248
    %v250 = vrot.slane %v242, %v249
    %251 = vrot.lane.b32.xlu0 %v246, 32
    %v252 = vpop.permute.xlu0 %251
    %253 = vrot.lane.b32.xlu0 %v250, 32
    %v254 = vpop.permute.xlu0 %253
    %vm257 = vcmask 261120
    %v258 = vsel %vm257, %v123, %v252
    %v259 = vsel %vm257, %v128, %v254
    %v262 = vrot.slane %v258, 4
    %v263 = vrot.slane %v259, 4
    %v266 = vsel %vm52, 0.0, %v262
    %v267 = vsel %vm52, 0.0, %v263
    %vm270 = vcmask 1046528
    %v271 = vrot.slane %v266, 1
    %v272 = vrot.slane %v262, 1
    %v273 = vsel %vm270, %v271, %v272
    %v274 = vrot.slane %v267, 1
    %v275 = vrot.slane %v263, 1
    %v276 = vsel %vm270, %v274, %v275
    %277 = vrot.lane.b32.xlu0 %v273, 64
    %v278 = vpop.permute.xlu0 %277
    %279 = vrot.lane.b32.xlu0 %v276, 64
    %v280 = vpop.permute.xlu0 %279
    %vm283 = vcmask 1045504
    %v284 = vrot.slane %v266, 2
    %v285 = vrot.slane %v262, 2
    %v286 = vsel %vm283, %v284, %v285
    %v287 = vrot.slane %v267, 2
    %v288 = vrot.slane %v263, 2
    %v289 = vsel %vm283, %v287, %v288
    %vm292 = vcmask 1044480
    %v293 = vrot.slane %v266, 3
    %v294 = vrot.slane %v262, 3
    %v295 = vsel %vm292, %v293, %v294
    %v296 = vrot.slane %v267, 3
    %v297 = vrot.slane %v263, 3
    %v298 = vsel %vm292, %v296, %v297
    %299 = vrot.lane.b32.xlu0 %v295, 64
    %v300 = vpop.permute.xlu0 %299
    %301 = vrot.lane.b32.xlu0 %v298, 64
    %v302 = vpop.permute.xlu0 %301
    %v305 = vrot.slane %v266, 4
    %v306 = vrot.slane %v262, 4
    %v307 = vsel %vm52, %v305, %v306
    %v308 = vrot.slane %v267, 4
    %v309 = vrot.slane %v263, 4
    %v310 = vsel %vm52, %v308, %v309
    %vm311 = vcmask 523264
    %v312 = vsel %vm311, %v266, %v278
    %v313 = vsel %vm311, %v267, %v280
    %v314 = vsel %vm311, %v286, %v300
    %v315 = vsel %vm311, %v289, %v302
    %v316 = vld [vmem:[%s5] sm:$0xff]
    %v317 = vld [vmem:[%s5 + $0x8] sm:$0xff]
    %v318 = vld [vmem:[%s5 + $0x10] sm:$0xff]
    %v319 = vld [vmem:[%s5 + $0x18] sm:$0xff]
    %v320 = vld [vmem:[%s5 + $0x20] sm:$0xff]
    %v321 = vld [vmem:[%s5 + $0x28] sm:$0xff]
    %v322 = vld [vmem:[%s5 + $0x30] sm:$0xff]
    %v323 = vld [vmem:[%s5 + $0x38] sm:$0xff]
    %v324 = vld [vmem:[%s5 + $0x40] sm:$0xff]
    %v325 = vld [vmem:[%s5 + $0x48] sm:$0xff]
    %v326 = vld [vmem:[%s5 + $0x50] sm:$0xff]
    %v327 = vld [vmem:[%s5 + $0x58] sm:$0xff]
    %v328 = vld [vmem:[%s5 + $0x60] sm:$0xff]
    %v329 = vld [vmem:[%s5 + $0x68] sm:$0xff]
    %v330 = vld [vmem:[%s5 + $0x70] sm:$0xff]
    %v331 = vld [vmem:[%s5 + $0x78] sm:$0xff]
    %v332 = vld [vmem:[%s5 + $0x80] sm:$0xff]
    %v333 = vld [vmem:[%s5 + $0x88] sm:$0xff]
    %v334 = vld [vmem:[%s5 + $0x90] sm:$0xff]
    %v335 = vld [vmem:[%s5 + $0x98] sm:$0xff]
    %v336 = vld [vmem:[%s5 + $0xa0] sm:$0xff]
    %v337 = vld [vmem:[%s5 + $0xa8] sm:$0xff]
    %v338 = vld [vmem:[%s5 + $0xb0] sm:$0xff]
    %v339 = vld [vmem:[%s5 + $0xb8] sm:$0xff]
    %v340 = vld [vmem:[%s5 + $0xc0] sm:$0xff]
    %v341 = vld [vmem:[%s5 + $0xc8] sm:$0xff]
    %v342 = vld [vmem:[%s5 + $0xd0] sm:$0xff]
    %v343 = vld [vmem:[%s5 + $0xd8] sm:$0xff]
    %v344 = vld [vmem:[%s5 + $0xe0] sm:$0xff]
    %v345 = vld [vmem:[%s5 + $0xe8] sm:$0xff]
    %v346 = vld [vmem:[%s5 + $0xf0] sm:$0xff]
    %v347 = vld [vmem:[%s5 + $0xf8] sm:$0xff]
    %v348 = vld [vmem:[%s5 + $0x100] sm:$0xff]
    %v349 = vld [vmem:[%s5 + $0x108] sm:$0xff]
    %v350 = vld [vmem:[%s5 + $0x110] sm:$0xff]
    %v351 = vld [vmem:[%s5 + $0x118] sm:$0xff]
    %v352 = vld [vmem:[%s5 + $0x120] sm:$0xff]
    %v353 = vld [vmem:[%s5 + $0x128] sm:$0xff]
    %v354 = vld [vmem:[%s5 + $0x130] sm:$0xff]
    %v355 = vld [vmem:[%s5 + $0x138] sm:$0xff]
    %v356 = vlaneseq
    %v357 = vshrl.u32 %v356, 7
    %v358 = vsub.s32 0, %v357
    %v359 = vrot.slane %v39, %v358
    %v360 = vsel %vm311, %v307, 0
    %v362 = vsel %vm311, %v310, 0
    %364 = vmatprep.subr.mxu0 0.0
    %365 = vmatpush1.msra.mxu0 %v316
    %366 = vmatprep.subr.mxu0 0.0
    %367 = vmatpush1.msra.mxu0 %v317
    %368 = vmatprep.subr.mxu0 0.0
    %369 = vmatpush1.msra.mxu0 %v318
    %370 = vmatprep.subr.mxu0 0.0
    %371 = vmatpush1.msra.mxu0 %v319
    %372 = vmatprep.subr.mxu0 0.0
    %373 = vmatpush1.msra.mxu0 %v320
    %374 = vmatprep.subr.mxu0 0.0
    %375 = vmatpush1.msra.mxu0 %v321
    %376 = vmatprep.subr.mxu0 0.0
    %377 = vmatpush1.msra.mxu0 %v322
    %378 = vmatprep.subr.mxu0 0.0
    %379 = vmatpush1.msra.mxu0 %v323
    %380 = vmatprep.subr.mxu0 0.0
    %381 = vmatpush1.msra.mxu0 %v324
    %382 = vmatprep.subr.mxu0 0.0
    %383 = vmatpush1.msra.mxu0 %v325
    %384 = vmatprep.subr.mxu0 0.0
    %385 = vmatpush1.msra.mxu0 %v326
    %386 = vmatprep.subr.mxu0 0.0
    %387 = vmatpush1.msra.mxu0 %v327
    %388 = vmatprep.subr.mxu0 0.0
    %389 = vmatpush1.msra.mxu0 %v328
    %390 = vmatprep.subr.mxu0 0.0
    %391 = vmatpush1.msra.mxu0 %v329
    %392 = vmatprep.subr.mxu0 0.0
    %393 = vmatpush1.msra.mxu0 %v330
    %394 = vmatprep.subr.mxu0 0.0
    %395 = vmatpush1.msra.mxu0 %v331
    %396 = vmatprep.subr.mxu0 0.0
    %397 = vmatpush1.msra.mxu0 %v332
    %398 = vmatprep.subr.mxu0 0.0
    %399 = vmatpush1.msra.mxu0 %v333
    %400 = vmatprep.subr.mxu0 0.0
    %401 = vmatpush1.msra.mxu0 %v334
    %402 = vmatprep.subr.mxu0 0.0
    %403 = vmatpush1.msra.mxu0 %v335
    %404 = vmatprep.subr.mxu0 0.0
    %405 = vmatpush1.msra.mxu0 %v336
    %406 = vmatprep.subr.mxu0 0.0
    %407 = vmatpush1.msra.mxu0 %v337
    %408 = vmatprep.subr.mxu0 0.0
    %409 = vmatpush1.msra.mxu0 %v338
    %410 = vmatprep.subr.mxu0 0.0
    %411 = vmatpush1.msra.mxu0 %v339
    %412 = vmatprep.subr.mxu0 0.0
    %413 = vmatpush1.msra.mxu0 %v340
    %414 = vmatprep.subr.mxu0 0.0
    %415 = vmatpush1.msra.mxu0 %v341
    %416 = vmatprep.subr.mxu0 0.0
    %417 = vmatpush1.msra.mxu0 %v342
    %418 = vmatprep.subr.mxu0 0.0
    %419 = vmatpush1.msra.mxu0 %v343
    %420 = vmatprep.subr.mxu0 0.0
    %421 = vmatpush1.msra.mxu0 %v344
    %422 = vmatprep.subr.mxu0 0.0
    %423 = vmatpush1.msra.mxu0 %v345
    %424 = vmatprep.subr.mxu0 0.0
    %425 = vmatpush1.msra.mxu0 %v346
    %426 = vmatprep.subr.mxu0 0.0
    %427 = vmatpush1.msra.mxu0 %v347
    %428 = vmatprep.mubr.f32.mxu0 %v314
    %429 = vmatmul.mubr.f32.gmra.mrb[0].mxu0 %v312
    %v430 = vpop.f32.mrb[0].mxu0
    %v431 = vadd.f32 %v359, %v430
    %v432 = vpop.f32.mrb[0].mxu0
    %433 = vmatprep.mubr.f32.mxu0 %v315
    %434 = vmatmul.mubr.f32.gmra.mrb[0].mxu0 %v313
    %v435 = vpop.f32.mrb[0].mxu0
    %v436 = vadd.f32 %v359, %v435
    %v437 = vpop.f32.mrb[0].mxu0
    %438 = vdwg.mxu0
    %439 = vmatprep.subr.mxu0 0.0
    %440 = vmatpush1.msra.mxu0 %v348
    %441 = vmatprep.subr.mxu0 0.0
    %442 = vmatpush1.msra.mxu0 %v349
    %443 = vmatprep.subr.mxu0 0.0
    %444 = vmatpush1.msra.mxu0 %v350
    %445 = vmatprep.subr.mxu0 0.0
    %446 = vmatpush1.msra.mxu0 %v351
    %447 = vmatprep.subr.mxu0 0.0
    %448 = vmatpush1.msra.mxu0 %v352
    %449 = vmatprep.subr.mxu0 0.0
    %450 = vmatpush1.msra.mxu0 %v353
    %451 = vmatprep.subr.mxu0 0.0
    %452 = vmatpush1.msra.mxu0 %v354
    %453 = vmatprep.subr.mxu0 0.0
    %454 = vmatpush1.msra.mxu0 %v355
    %455 = vmatprep.subr.mxu0 0.0
    %456 = vmatpush1.msra.mxu0 0.0
    %457 = vmatprep.subr.mxu0 0.0
    %458 = vmatpush1.msra.mxu0 0.0
    %459 = vmatprep.subr.mxu0 0.0
    %460 = vmatpush1.msra.mxu0 0.0
    %461 = vmatprep.subr.mxu0 0.0
    %462 = vmatpush1.msra.mxu0 0.0
    %463 = vmatprep.subr.mxu0 0.0
    %464 = vmatpush1.msra.mxu0 0.0
    %465 = vmatprep.subr.mxu0 0.0
    %466 = vmatpush1.msra.mxu0 0.0
    %467 = vmatprep.subr.mxu0 0.0
    %468 = vmatpush1.msra.mxu0 0.0
    %469 = vmatprep.subr.mxu0 0.0
    %470 = vmatpush1.msra.mxu0 0.0
    %471 = vmatprep.subr.mxu0 0.0
    %472 = vmatpush1.msra.mxu0 0.0
    %473 = vmatprep.subr.mxu0 0.0
    %474 = vmatpush1.msra.mxu0 0.0
    %475 = vmatprep.subr.mxu0 0.0
    %476 = vmatpush1.msra.mxu0 0.0
    %477 = vmatprep.subr.mxu0 0.0
    %478 = vmatpush1.msra.mxu0 0.0
    %479 = vmatprep.subr.mxu0 0.0
    %480 = vmatpush1.msra.mxu0 0.0
    %481 = vmatprep.subr.mxu0 0.0
    %482 = vmatpush1.msra.mxu0 0.0
    %483 = vmatprep.subr.mxu0 0.0
    %484 = vmatpush1.msra.mxu0 0.0
    %485 = vmatprep.subr.mxu0 0.0
    %486 = vmatpush1.msra.mxu0 0.0
    %487 = vmatprep.subr.mxu0 0.0
    %488 = vmatpush1.msra.mxu0 0.0
    %489 = vmatprep.subr.mxu0 0.0
    %490 = vmatpush1.msra.mxu0 0.0
    %491 = vmatprep.subr.mxu0 0.0
    %492 = vmatpush1.msra.mxu0 0.0
    %493 = vmatprep.subr.mxu0 0.0
    %494 = vmatpush1.msra.mxu0 0.0
    %495 = vmatprep.subr.mxu0 0.0
    %496 = vmatpush1.msra.mxu0 0.0
    %497 = vmatprep.subr.mxu0 0.0
    %498 = vmatpush1.msra.mxu0 0.0
    %499 = vmatprep.subr.mxu0 0.0
    %500 = vmatpush1.msra.mxu0 0.0
    %501 = vmatprep.subr.mxu0 0.0
    %502 = vmatpush1.msra.mxu0 0.0
    %503 = vmatprep.mubr.f32.mxu0 0.0
    %504 = vmatmul.mubr.f32.gmra.mrb[0].mxu0 %v360
    %v505 = vpop.f32.mrb[0].mxu0
    %v506 = vadd.f32 %v431, %v505
    %v507 = vpop.f32.mrb[0].mxu0
    %508 = vmatprep.mubr.f32.mxu0 0.0
    %509 = vmatmul.mubr.f32.gmra.mrb[0].mxu0 %v362
    %v510 = vpop.f32.mrb[0].mxu0
    %v511 = vadd.f32 %v436, %v510
    %v512 = vpop.f32.mrb[0].mxu0
    %513 = vdwg.mxu0
    %v514 = vxor.u32 %v506, 2147483648
    %v515 = vxor.u32 %v511, 2147483648
    %v516 = vmul.f32 %v514, 1.442695
    %v517 = vpow.pop %v516
    %v518 = vmul.f32 %v515, 1.442695
    %v519 = vpow.pop %v518
    %v520 = vadd.f32 %v517, 1.0
    %v521 = vadd.f32 %v519, 1.0
    %v522 = vrcp.pop %v520
    %v523 = vmul.f32 1.0, %v522
    %v524 = vrcp.pop %v521
    %v525 = vmul.f32 1.0, %v524
    %528 = vrot.lane.b32.xlu0 %v523, 96
    %v529 = vpop.permute.xlu0 %528
    %530 = vrot.lane.b32.xlu0 %v525, 96
    %v531 = vpop.permute.xlu0 %530
    %v534 = vmul.f32 %v506, %v529
    %v535 = vmul.f32 %v511, %v531
    %v536 = vld [vmem:[%s6] sm:$0xff]
    %v537 = vld [vmem:[%s6 + $0x8] sm:$0xff]
    %v538 = vld [vmem:[%s6 + $0x10] sm:$0xff]
    %v539 = vld [vmem:[%s6 + $0x18] sm:$0xff]
    %v540 = vlaneseq
    %v541 = vshrl.u32 %v540, 7
    %v542 = vsub.s32 1, %v541
    %v543 = vrot.slane %v39, %v542
    %v545 = vsel %vm257, %v534, 0
    %v548 = vsel %vm257, %v535, 0
    %550 = vmatprep.subr.mxu0 0.0
    %551 = vmatpush1.msra.mxu0 %v536
    %552 = vmatprep.subr.mxu0 0.0
    %553 = vmatpush1.msra.mxu0 %v537
    %554 = vmatprep.subr.mxu0 0.0
    %555 = vmatpush1.msra.mxu0 %v538
    %556 = vmatprep.subr.mxu0 0.0
    %557 = vmatpush1.msra.mxu0 %v539
    %558 = vmatprep.subr.mxu0 0.0
    %559 = vmatpush1.msra.mxu0 0.0
    %560 = vmatprep.subr.mxu0 0.0
    %561 = vmatpush1.msra.mxu0 0.0
    %562 = vmatprep.subr.mxu0 0.0
    %563 = vmatpush1.msra.mxu0 0.0
    %564 = vmatprep.subr.mxu0 0.0
    %565 = vmatpush1.msra.mxu0 0.0
    %566 = vmatprep.subr.mxu0 0.0
    %567 = vmatpush1.msra.mxu0 0.0
    %568 = vmatprep.subr.mxu0 0.0
    %569 = vmatpush1.msra.mxu0 0.0
    %570 = vmatprep.subr.mxu0 0.0
    %571 = vmatpush1.msra.mxu0 0.0
    %572 = vmatprep.subr.mxu0 0.0
    %573 = vmatpush1.msra.mxu0 0.0
    %574 = vmatprep.subr.mxu0 0.0
    %575 = vmatpush1.msra.mxu0 0.0
    %576 = vmatprep.subr.mxu0 0.0
    %577 = vmatpush1.msra.mxu0 0.0
    %578 = vmatprep.subr.mxu0 0.0
    %579 = vmatpush1.msra.mxu0 0.0
    %580 = vmatprep.subr.mxu0 0.0
    %581 = vmatpush1.msra.mxu0 0.0
    %582 = vmatprep.subr.mxu0 0.0
    %583 = vmatpush1.msra.mxu0 0.0
    %584 = vmatprep.subr.mxu0 0.0
    %585 = vmatpush1.msra.mxu0 0.0
    %586 = vmatprep.subr.mxu0 0.0
    %587 = vmatpush1.msra.mxu0 0.0
    %588 = vmatprep.subr.mxu0 0.0
    %589 = vmatpush1.msra.mxu0 0.0
    %590 = vmatprep.subr.mxu0 0.0
    %591 = vmatpush1.msra.mxu0 0.0
    %592 = vmatprep.subr.mxu0 0.0
    %593 = vmatpush1.msra.mxu0 0.0
    %594 = vmatprep.subr.mxu0 0.0
    %595 = vmatpush1.msra.mxu0 0.0
    %596 = vmatprep.subr.mxu0 0.0
    %597 = vmatpush1.msra.mxu0 0.0
    %598 = vmatprep.subr.mxu0 0.0
    %599 = vmatpush1.msra.mxu0 0.0
    %600 = vmatprep.subr.mxu0 0.0
    %601 = vmatpush1.msra.mxu0 0.0
    %602 = vmatprep.subr.mxu0 0.0
    %603 = vmatpush1.msra.mxu0 0.0
    %604 = vmatprep.subr.mxu0 0.0
    %605 = vmatpush1.msra.mxu0 0.0
    %606 = vmatprep.subr.mxu0 0.0
    %607 = vmatpush1.msra.mxu0 0.0
    %608 = vmatprep.subr.mxu0 0.0
    %609 = vmatpush1.msra.mxu0 0.0
    %610 = vmatprep.subr.mxu0 0.0
    %611 = vmatpush1.msra.mxu0 0.0
    %612 = vmatprep.subr.mxu0 0.0
    %613 = vmatpush1.msra.mxu0 0.0
    %614 = vmatprep.mubr.f32.mxu0 0.0
    %615 = vmatmul.mubr.f32.gmra.mrb[0].mxu0 %v545
    %v616 = vpop.f32.mrb[0].mxu0
    %v617 = vadd.f32 %v543, %v616
    %v618 = vpop.f32.mrb[0].mxu0
    %619 = vmatprep.mubr.f32.mxu0 0.0
    %620 = vmatmul.mubr.f32.gmra.mrb[0].mxu0 %v548
    %v621 = vpop.f32.mrb[0].mxu0
    %v622 = vadd.f32 %v543, %v621
    %v623 = vpop.f32.mrb[0].mxu0
    %624 = vdwg.mxu0
    %v625 = vadd.f32 %v617, %v123
    %v626 = vadd.f32 %v622, %v128
    %v627 = vmul.f32 %v625, 0.70710677
    %v628 = vmul.f32 %v626, 0.70710677
    %v629 = vld [vmem:[%s2] sm:$0xff]
    %v630 = vld [vmem:[%s2 + $0x8] sm:$0xff]
    %v631 = vld [vmem:[%s2 + $0x10] sm:$0xff]
    %v632 = vld [vmem:[%s2 + $0x18] sm:$0xff]
    %v634 = vsel %vm257, %v627, 0
    %v637 = vsel %vm257, %v629, 0
    %v640 = vsel %vm257, %v630, 0
    %642 = vmatprep.subr.mxu0 0.0
    %643 = vmatpush1.xpose.msra.mxu0 %v637
    %644 = vmatprep.subr.mxu0 0.0
    %645 = vmatpush1.xpose.msra.mxu0 %v640
    %646 = vmatprep.subr.mxu0 0.0
    %647 = vmatpush1.xpose.msra.mxu0 0.0
    %648 = vmatprep.subr.mxu0 0.0
    %649 = vmatpush1.xpose.msra.mxu0 0.0
    %650 = vmatprep.subr.mxu0 0.0
    %651 = vmatpush1.xpose.msra.mxu0 0.0
    %652 = vmatprep.subr.mxu0 0.0
    %653 = vmatpush1.xpose.msra.mxu0 0.0
    %654 = vmatprep.subr.mxu0 0.0
    %655 = vmatpush1.xpose.msra.mxu0 0.0
    %656 = vmatprep.subr.mxu0 0.0
    %657 = vmatpush1.xpose.msra.mxu0 0.0
    %658 = vmatprep.subr.mxu0 0.0
    %659 = vmatpush1.xpose.msra.mxu0 0.0
    %660 = vmatprep.subr.mxu0 0.0
    %661 = vmatpush1.xpose.msra.mxu0 0.0
    %662 = vmatprep.subr.mxu0 0.0
    %663 = vmatpush1.xpose.msra.mxu0 0.0
    %664 = vmatprep.subr.mxu0 0.0
    %665 = vmatpush1.xpose.msra.mxu0 0.0
    %666 = vmatprep.subr.mxu0 0.0
    %667 = vmatpush1.xpose.msra.mxu0 0.0
    %668 = vmatprep.subr.mxu0 0.0
    %669 = vmatpush1.xpose.msra.mxu0 0.0
    %670 = vmatprep.subr.mxu0 0.0
    %671 = vmatpush1.xpose.msra.mxu0 0.0
    %672 = vmatprep.subr.mxu0 0.0
    %673 = vmatpush1.xpose.msra.mxu0 0.0
    %674 = vmatprep.subr.mxu0 0.0
    %675 = vmatpush1.xpose.msra.mxu0 0.0
    %676 = vmatprep.subr.mxu0 0.0
    %677 = vmatpush1.xpose.msra.mxu0 0.0
    %678 = vmatprep.subr.mxu0 0.0
    %679 = vmatpush1.xpose.msra.mxu0 0.0
    %680 = vmatprep.subr.mxu0 0.0
    %681 = vmatpush1.xpose.msra.mxu0 0.0
    %682 = vmatprep.subr.mxu0 0.0
    %683 = vmatpush1.xpose.msra.mxu0 0.0
    %684 = vmatprep.subr.mxu0 0.0
    %685 = vmatpush1.xpose.msra.mxu0 0.0
    %686 = vmatprep.subr.mxu0 0.0
    %687 = vmatpush1.xpose.msra.mxu0 0.0
    %688 = vmatprep.subr.mxu0 0.0
    %689 = vmatpush1.xpose.msra.mxu0 0.0
    %690 = vmatprep.subr.mxu0 0.0
    %691 = vmatpush1.xpose.msra.mxu0 0.0
    %692 = vmatprep.subr.mxu0 0.0
    %693 = vmatpush1.xpose.msra.mxu0 0.0
    %694 = vmatprep.subr.mxu0 0.0
    %695 = vmatpush1.xpose.msra.mxu0 0.0
    %696 = vmatprep.subr.mxu0 0.0
    %697 = vmatpush1.xpose.msra.mxu0 0.0
    %698 = vmatprep.subr.mxu0 0.0
    %699 = vmatpush1.xpose.msra.mxu0 0.0
    %700 = vmatprep.subr.mxu0 0.0
    %701 = vmatpush1.xpose.msra.mxu0 0.0
    %702 = vmatprep.subr.mxu0 0.0
    %703 = vmatpush1.xpose.msra.mxu0 0.0
    %704 = vmatprep.subr.mxu0 0.0
    %705 = vmatpush1.xpose.msra.mxu0 0.0
    %706 = vmatprep.mubr.f32.mxu0 0.0
    %707 = vmatmul.mubr.f32.gmra.mrb[0].mxu0 %v634
    %v708 = vpop.f32.mrb[0].mxu0
    %v709 = vadd.f32 0.0, %v708
    %v710 = vpop.f32.mrb[0].mxu0
    %711 = vdwg.mxu0
    %v713 = vsel %vm257, %v628, 0
    %v716 = vsel %vm257, %v631, 0
    %v719 = vsel %vm257, %v632, 0
    %721 = vmatprep.subr.mxu0 0.0
    %722 = vmatpush1.xpose.msra.mxu0 %v716
    %723 = vmatprep.subr.mxu0 0.0
    %724 = vmatpush1.xpose.msra.mxu0 %v719
    %725 = vmatprep.subr.mxu0 0.0
    %726 = vmatpush1.xpose.msra.mxu0 0.0
    %727 = vmatprep.subr.mxu0 0.0
    %728 = vmatpush1.xpose.msra.mxu0 0.0
    %729 = vmatprep.subr.mxu0 0.0
    %730 = vmatpush1.xpose.msra.mxu0 0.0
    %731 = vmatprep.subr.mxu0 0.0
    %732 = vmatpush1.xpose.msra.mxu0 0.0
    %733 = vmatprep.subr.mxu0 0.0
    %734 = vmatpush1.xpose.msra.mxu0 0.0
    %735 = vmatprep.subr.mxu0 0.0
    %736 = vmatpush1.xpose.msra.mxu0 0.0
    %737 = vmatprep.subr.mxu0 0.0
    %738 = vmatpush1.xpose.msra.mxu0 0.0
    %739 = vmatprep.subr.mxu0 0.0
    %740 = vmatpush1.xpose.msra.mxu0 0.0
    %741 = vmatprep.subr.mxu0 0.0
    %742 = vmatpush1.xpose.msra.mxu0 0.0
    %743 = vmatprep.subr.mxu0 0.0
    %744 = vmatpush1.xpose.msra.mxu0 0.0
    %745 = vmatprep.subr.mxu0 0.0
    %746 = vmatpush1.xpose.msra.mxu0 0.0
    %747 = vmatprep.subr.mxu0 0.0
    %748 = vmatpush1.xpose.msra.mxu0 0.0
    %749 = vmatprep.subr.mxu0 0.0
    %750 = vmatpush1.xpose.msra.mxu0 0.0
    %751 = vmatprep.subr.mxu0 0.0
    %752 = vmatpush1.xpose.msra.mxu0 0.0
    %753 = vmatprep.subr.mxu0 0.0
    %754 = vmatpush1.xpose.msra.mxu0 0.0
    %755 = vmatprep.subr.mxu0 0.0
    %756 = vmatpush1.xpose.msra.mxu0 0.0
    %757 = vmatprep.subr.mxu0 0.0
    %758 = vmatpush1.xpose.msra.mxu0 0.0
    %759 = vmatprep.subr.mxu0 0.0
    %760 = vmatpush1.xpose.msra.mxu0 0.0
    %761 = vmatprep.subr.mxu0 0.0
    %762 = vmatpush1.xpose.msra.mxu0 0.0
    %763 = vmatprep.subr.mxu0 0.0
    %764 = vmatpush1.xpose.msra.mxu0 0.0
    %765 = vmatprep.subr.mxu0 0.0
    %766 = vmatpush1.xpose.msra.mxu0 0.0
    %767 = vmatprep.subr.mxu0 0.0
    %768 = vmatpush1.xpose.msra.mxu0 0.0
    %769 = vmatprep.subr.mxu0 0.0
    %770 = vmatpush1.xpose.msra.mxu0 0.0
    %771 = vmatprep.subr.mxu0 0.0
    %772 = vmatpush1.xpose.msra.mxu0 0.0
    %773 = vmatprep.subr.mxu0 0.0
    %774 = vmatpush1.xpose.msra.mxu0 0.0
    %775 = vmatprep.subr.mxu0 0.0
    %776 = vmatpush1.xpose.msra.mxu0 0.0
    %777 = vmatprep.subr.mxu0 0.0
    %778 = vmatpush1.xpose.msra.mxu0 0.0
    %779 = vmatprep.subr.mxu0 0.0
    %780 = vmatpush1.xpose.msra.mxu0 0.0
    %781 = vmatprep.subr.mxu0 0.0
    %782 = vmatpush1.xpose.msra.mxu0 0.0
    %783 = vmatprep.subr.mxu0 0.0
    %784 = vmatpush1.xpose.msra.mxu0 0.0
    %785 = vmatprep.mubr.f32.mxu0 0.0
    %786 = vmatmul.mubr.f32.gmra.mrb[0].mxu0 %v713
    %v787 = vpop.f32.mrb[0].mxu0
    %v788 = vadd.f32 0.0, %v787
    %v789 = vpop.f32.mrb[0].mxu0
    %790 = vdwg.mxu0
    %vm791 = vcmask 130048
    %v792 = vsel %vm791, %v709, -inf
    %v793 = vsel %vm791, %v788, -inf
    %v794 = vmax.f32 %v792, %v793
    %v795 = vrot.slane %v794, 4
    %v796 = vmax.f32 %v794, %v795
    %v797 = vrot.slane %v796, 2
    %v798 = vmax.f32 %v796, %v797
    %v799 = vrot.slane %v798, 1
    %v800 = vmax.f32 %v798, %v799
    %v801 = vsub.f32 %v709, %v800
    %v802 = vsub.f32 %v788, %v800
    %v803 = vmul.f32 %v801, 1.442695
    %v804 = vpow.pop %v803
    %v805 = vmul.f32 %v802, 1.442695
    %v806 = vpow.pop %v805
    %v807 = vsel %vm791, %v804, 0.0
    %v808 = vsel %vm791, %v806, 0.0
    %v809 = vadd.f32 %v807, %v808
    %v810 = vrot.slane %v809, 4
    %v811 = vadd.f32 %v809, %v810
    %v812 = vrot.slane %v811, 2
    %v813 = vadd.f32 %v811, %v812
    %v814 = vrot.slane %v813, 1
    %v815 = vadd.f32 %v813, %v814
    %v816 = vrcp.pop %v815
    %v817 = vmul.f32 %v804, %v816
    %v818 = vmul.f32 %v806, %v816
    %819 = vst.msk [vmem:[#allocation4] sm:$0xff] %vm791, %v817
    %820 = vst.msk [vmem:[#allocation4 + $0x8] sm:$0xff] %vm791, %v818
    %v822 = vsel %vm791, %v817, 0
    %824 = vmatprep.subr.mxu0 0.0
    %825 = vmatpush1.msra.mxu0 %v629
    %826 = vmatprep.subr.mxu0 0.0
    %827 = vmatpush1.msra.mxu0 %v630
    %828 = vmatprep.subr.mxu0 0.0
    %829 = vmatpush1.msra.mxu0 0.0
    %830 = vmatprep.subr.mxu0 0.0
    %831 = vmatpush1.msra.mxu0 0.0
    %832 = vmatprep.subr.mxu0 0.0
    %833 = vmatpush1.msra.mxu0 0.0
    %834 = vmatprep.subr.mxu0 0.0
    %835 = vmatpush1.msra.mxu0 0.0
    %836 = vmatprep.subr.mxu0 0.0
    %837 = vmatpush1.msra.mxu0 0.0
    %838 = vmatprep.subr.mxu0 0.0
    %839 = vmatpush1.msra.mxu0 0.0
    %840 = vmatprep.subr.mxu0 0.0
    %841 = vmatpush1.msra.mxu0 0.0
    %842 = vmatprep.subr.mxu0 0.0
    %843 = vmatpush1.msra.mxu0 0.0
    %844 = vmatprep.subr.mxu0 0.0
    %845 = vmatpush1.msra.mxu0 0.0
    %846 = vmatprep.subr.mxu0 0.0
    %847 = vmatpush1.msra.mxu0 0.0
    %848 = vmatprep.subr.mxu0 0.0
    %849 = vmatpush1.msra.mxu0 0.0
    %850 = vmatprep.subr.mxu0 0.0
    %851 = vmatpush1.msra.mxu0 0.0
    %852 = vmatprep.subr.mxu0 0.0
    %853 = vmatpush1.msra.mxu0 0.0
    %854 = vmatprep.subr.mxu0 0.0
    %855 = vmatpush1.msra.mxu0 0.0
    %856 = vmatprep.subr.mxu0 0.0
    %857 = vmatpush1.msra.mxu0 0.0
    %858 = vmatprep.subr.mxu0 0.0
    %859 = vmatpush1.msra.mxu0 0.0
    %860 = vmatprep.subr.mxu0 0.0
    %861 = vmatpush1.msra.mxu0 0.0
    %862 = vmatprep.subr.mxu0 0.0
    %863 = vmatpush1.msra.mxu0 0.0
    %864 = vmatprep.subr.mxu0 0.0
    %865 = vmatpush1.msra.mxu0 0.0
    %866 = vmatprep.subr.mxu0 0.0
    %867 = vmatpush1.msra.mxu0 0.0
    %868 = vmatprep.subr.mxu0 0.0
    %869 = vmatpush1.msra.mxu0 0.0
    %870 = vmatprep.subr.mxu0 0.0
    %871 = vmatpush1.msra.mxu0 0.0
    %872 = vmatprep.subr.mxu0 0.0
    %873 = vmatpush1.msra.mxu0 0.0
    %874 = vmatprep.subr.mxu0 0.0
    %875 = vmatpush1.msra.mxu0 0.0
    %876 = vmatprep.subr.mxu0 0.0
    %877 = vmatpush1.msra.mxu0 0.0
    %878 = vmatprep.subr.mxu0 0.0
    %879 = vmatpush1.msra.mxu0 0.0
    %880 = vmatprep.subr.mxu0 0.0
    %881 = vmatpush1.msra.mxu0 0.0
    %882 = vmatprep.subr.mxu0 0.0
    %883 = vmatpush1.msra.mxu0 0.0
    %884 = vmatprep.subr.mxu0 0.0
    %885 = vmatpush1.msra.mxu0 0.0
    %886 = vmatprep.subr.mxu0 0.0
    %887 = vmatpush1.msra.mxu0 0.0
    %888 = vmatprep.mubr.f32.mxu0 0.0
    %889 = vmatmul.mubr.f32.gmra.mrb[0].mxu0 %v822
    %v890 = vpop.f32.mrb[0].mxu0
    %v891 = vadd.f32 0.0, %v890
    %v892 = vpop.f32.mrb[0].mxu0
    %893 = vdwg.mxu0
    %v895 = vsel %vm791, %v818, 0
    %897 = vmatprep.subr.mxu0 0.0
    %898 = vmatpush1.msra.mxu0 %v631
    %899 = vmatprep.subr.mxu0 0.0
    %900 = vmatpush1.msra.mxu0 %v632
    %901 = vmatprep.subr.mxu0 0.0
    %902 = vmatpush1.msra.mxu0 0.0
    %903 = vmatprep.subr.mxu0 0.0
    %904 = vmatpush1.msra.mxu0 0.0
    %905 = vmatprep.subr.mxu0 0.0
    %906 = vmatpush1.msra.mxu0 0.0
    %907 = vmatprep.subr.mxu0 0.0
    %908 = vmatpush1.msra.mxu0 0.0
    %909 = vmatprep.subr.mxu0 0.0
    %910 = vmatpush1.msra.mxu0 0.0
    %911 = vmatprep.subr.mxu0 0.0
    %912 = vmatpush1.msra.mxu0 0.0
    %913 = vmatprep.subr.mxu0 0.0
    %914 = vmatpush1.msra.mxu0 0.0
    %915 = vmatprep.subr.mxu0 0.0
    %916 = vmatpush1.msra.mxu0 0.0
    %917 = vmatprep.subr.mxu0 0.0
    %918 = vmatpush1.msra.mxu0 0.0
    %919 = vmatprep.subr.mxu0 0.0
    %920 = vmatpush1.msra.mxu0 0.0
    %921 = vmatprep.subr.mxu0 0.0
    %922 = vmatpush1.msra.mxu0 0.0
    %923 = vmatprep.subr.mxu0 0.0
    %924 = vmatpush1.msra.mxu0 0.0
    %925 = vmatprep.subr.mxu0 0.0
    %926 = vmatpush1.msra.mxu0 0.0
    %927 = vmatprep.subr.mxu0 0.0
    %928 = vmatpush1.msra.mxu0 0.0
    %929 = vmatprep.subr.mxu0 0.0
    %930 = vmatpush1.msra.mxu0 0.0
    %931 = vmatprep.subr.mxu0 0.0
    %932 = vmatpush1.msra.mxu0 0.0
    %933 = vmatprep.subr.mxu0 0.0
    %934 = vmatpush1.msra.mxu0 0.0
    %935 = vmatprep.subr.mxu0 0.0
    %936 = vmatpush1.msra.mxu0 0.0
    %937 = vmatprep.subr.mxu0 0.0
    %938 = vmatpush1.msra.mxu0 0.0
    %939 = vmatprep.subr.mxu0 0.0
    %940 = vmatpush1.msra.mxu0 0.0
    %941 = vmatprep.subr.mxu0 0.0
    %942 = vmatpush1.msra.mxu0 0.0
    %943 = vmatprep.subr.mxu0 0.0
    %944 = vmatpush1.msra.mxu0 0.0
    %945 = vmatprep.subr.mxu0 0.0
    %946 = vmatpush1.msra.mxu0 0.0
    %947 = vmatprep.subr.mxu0 0.0
    %948 = vmatpush1.msra.mxu0 0.0
    %949 = vmatprep.subr.mxu0 0.0
    %950 = vmatpush1.msra.mxu0 0.0
    %951 = vmatprep.subr.mxu0 0.0
    %952 = vmatpush1.msra.mxu0 0.0
    %953 = vmatprep.subr.mxu0 0.0
    %954 = vmatpush1.msra.mxu0 0.0
    %955 = vmatprep.subr.mxu0 0.0
    %956 = vmatpush1.msra.mxu0 0.0
    %957 = vmatprep.subr.mxu0 0.0
    %958 = vmatpush1.msra.mxu0 0.0
    %959 = vmatprep.subr.mxu0 0.0
    %960 = vmatpush1.msra.mxu0 0.0
    %961 = vmatprep.mubr.f32.mxu0 0.0
    %962 = vmatmul.mubr.f32.gmra.mrb[0].mxu0 %v895
    %v963 = vpop.f32.mrb[0].mxu0
    %v964 = vadd.f32 0.0, %v963
    %v965 = vpop.f32.mrb[0].mxu0
    %966 = vdwg.mxu0
    %v967 = vld [vmem:[%s7] sm:$0xff]
    %v968 = vld [vmem:[%s7 + $0x8] sm:$0xff]
    %v969 = vld [vmem:[%s7 + $0x10] sm:$0xff]
    %v970 = vld [vmem:[%s7 + $0x18] sm:$0xff]
    %v971 = vlaneseq
    %v972 = vshrl.u32 %v971, 7
    %v973 = vsub.s32 2, %v972
    %v974 = vrot.slane %v39, %v973
    %v976 = vsel %vm257, %v891, 0
    %v979 = vsel %vm257, %v964, 0
    %981 = vmatprep.subr.mxu0 0.0
    %982 = vmatpush1.msra.mxu0 %v967
    %983 = vmatprep.subr.mxu0 0.0
    %984 = vmatpush1.msra.mxu0 %v968
    %985 = vmatprep.subr.mxu0 0.0
    %986 = vmatpush1.msra.mxu0 %v969
    %987 = vmatprep.subr.mxu0 0.0
    %988 = vmatpush1.msra.mxu0 %v970
    %989 = vmatprep.subr.mxu0 0.0
    %990 = vmatpush1.msra.mxu0 0.0
    %991 = vmatprep.subr.mxu0 0.0
    %992 = vmatpush1.msra.mxu0 0.0
    %993 = vmatprep.subr.mxu0 0.0
    %994 = vmatpush1.msra.mxu0 0.0
    %995 = vmatprep.subr.mxu0 0.0
    %996 = vmatpush1.msra.mxu0 0.0
    %997 = vmatprep.subr.mxu0 0.0
    %998 = vmatpush1.msra.mxu0 0.0
    %999 = vmatprep.subr.mxu0 0.0
    %1000 = vmatpush1.msra.mxu0 0.0
    %1001 = vmatprep.subr.mxu0 0.0
    %1002 = vmatpush1.msra.mxu0 0.0
    %1003 = vmatprep.subr.mxu0 0.0
    %1004 = vmatpush1.msra.mxu0 0.0
    %1005 = vmatprep.subr.mxu0 0.0
    %1006 = vmatpush1.msra.mxu0 0.0
    %1007 = vmatprep.subr.mxu0 0.0
    %1008 = vmatpush1.msra.mxu0 0.0
    %1009 = vmatprep.subr.mxu0 0.0
    %1010 = vmatpush1.msra.mxu0 0.0
    %1011 = vmatprep.subr.mxu0 0.0
    %1012 = vmatpush1.msra.mxu0 0.0
    %1013 = vmatprep.subr.mxu0 0.0
    %1014 = vmatpush1.msra.mxu0 0.0
    %1015 = vmatprep.subr.mxu0 0.0
    %1016 = vmatpush1.msra.mxu0 0.0
    %1017 = vmatprep.subr.mxu0 0.0
    %1018 = vmatpush1.msra.mxu0 0.0
    %1019 = vmatprep.subr.mxu0 0.0
    %1020 = vmatpush1.msra.mxu0 0.0
    %1021 = vmatprep.subr.mxu0 0.0
    %1022 = vmatpush1.msra.mxu0 0.0
    %1023 = vmatprep.subr.mxu0 0.0
    %1024 = vmatpush1.msra.mxu0 0.0
    %1025 = vmatprep.subr.mxu0 0.0
    %1026 = vmatpush1.msra.mxu0 0.0
    %1027 = vmatprep.subr.mxu0 0.0
    %1028 = vmatpush1.msra.mxu0 0.0
    %1029 = vmatprep.subr.mxu0 0.0
    %1030 = vmatpush1.msra.mxu0 0.0
    %1031 = vmatprep.subr.mxu0 0.0
    %1032 = vmatpush1.msra.mxu0 0.0
    %1033 = vmatprep.subr.mxu0 0.0
    %1034 = vmatpush1.msra.mxu0 0.0
    %1035 = vmatprep.subr.mxu0 0.0
    %1036 = vmatpush1.msra.mxu0 0.0
    %1037 = vmatprep.subr.mxu0 0.0
    %1038 = vmatpush1.msra.mxu0 0.0
    %1039 = vmatprep.subr.mxu0 0.0
    %1040 = vmatpush1.msra.mxu0 0.0
    %1041 = vmatprep.subr.mxu0 0.0
    %1042 = vmatpush1.msra.mxu0 0.0
    %1043 = vmatprep.subr.mxu0 0.0
    %1044 = vmatpush1.msra.mxu0 0.0
    %1045 = vmatprep.mubr.f32.mxu0 0.0
    %1046 = vmatmul.mubr.f32.gmra.mrb[0].mxu0 %v976
    %v1047 = vpop.f32.mrb[0].mxu0
    %v1048 = vadd.f32 %v974, %v1047
    %v1049 = vpop.f32.mrb[0].mxu0
    %1050 = vmatprep.mubr.f32.mxu0 0.0
    %1051 = vmatmul.mubr.f32.gmra.mrb[0].mxu0 %v979
    %v1052 = vpop.f32.mrb[0].mxu0
    %v1053 = vadd.f32 %v974, %v1052
    %v1054 = vpop.f32.mrb[0].mxu0
    %1055 = vdwg.mxu0
    %v1056 = vadd.f32 %v1048, %v534
    %v1057 = vadd.f32 %v1053, %v535
    %v1058 = vmul.f32 %v1056, 0.70710677
    %v1059 = vmul.f32 %v1057, 0.70710677
    %1062 = vrot.lane.b32.xlu0 %v506, 64
    %v1063 = vpop.permute.xlu0 %1062
    %1064 = vrot.lane.b32.xlu0 %v511, 64
    %v1065 = vpop.permute.xlu0 %1064
    %v1068 = vadd.f32 %v1058, %v1063
    %v1069 = vadd.f32 %v1059, %v1065
    %v1070 = vmul.f32 %v1068, 0.70710677
    %v1071 = vmul.f32 %v1069, 0.70710677
    %v1072 = vld [vmem:[%s8] sm:$0xff]
    %v1073 = vld [vmem:[%s8 + $0x8] sm:$0xff]
    %v1074 = vld [vmem:[%s8 + $0x10] sm:$0xff]
    %v1075 = vld [vmem:[%s8 + $0x18] sm:$0xff]
    %v1076 = vlaneseq
    %v1077 = vshrl.u32 %v1076, 7
    %v1078 = vsub.s32 3, %v1077
    %v1079 = vrot.slane %v39, %v1078
    %v1081 = vsel %vm257, %v1070, 0
    %v1084 = vsel %vm257, %v1071, 0
    %1086 = vmatprep.subr.mxu0 0.0
    %1087 = vmatpush1.msra.mxu0 %v1072
    %1088 = vmatprep.subr.mxu0 0.0
    %1089 = vmatpush1.msra.mxu0 %v1073
    %1090 = vmatprep.subr.mxu0 0.0
    %1091 = vmatpush1.msra.mxu0 %v1074
    %1092 = vmatprep.subr.mxu0 0.0
    %1093 = vmatpush1.msra.mxu0 %v1075
    %1094 = vmatprep.subr.mxu0 0.0
    %1095 = vmatpush1.msra.mxu0 0.0
    %1096 = vmatprep.subr.mxu0 0.0
    %1097 = vmatpush1.msra.mxu0 0.0
    %1098 = vmatprep.subr.mxu0 0.0
    %1099 = vmatpush1.msra.mxu0 0.0
    %1100 = vmatprep.subr.mxu0 0.0
    %1101 = vmatpush1.msra.mxu0 0.0
    %1102 = vmatprep.subr.mxu0 0.0
    %1103 = vmatpush1.msra.mxu0 0.0
    %1104 = vmatprep.subr.mxu0 0.0
    %1105 = vmatpush1.msra.mxu0 0.0
    %1106 = vmatprep.subr.mxu0 0.0
    %1107 = vmatpush1.msra.mxu0 0.0
    %1108 = vmatprep.subr.mxu0 0.0
    %1109 = vmatpush1.msra.mxu0 0.0
    %1110 = vmatprep.subr.mxu0 0.0
    %1111 = vmatpush1.msra.mxu0 0.0
    %1112 = vmatprep.subr.mxu0 0.0
    %1113 = vmatpush1.msra.mxu0 0.0
    %1114 = vmatprep.subr.mxu0 0.0
    %1115 = vmatpush1.msra.mxu0 0.0
    %1116 = vmatprep.subr.mxu0 0.0
    %1117 = vmatpush1.msra.mxu0 0.0
    %1118 = vmatprep.subr.mxu0 0.0
    %1119 = vmatpush1.msra.mxu0 0.0
    %1120 = vmatprep.subr.mxu0 0.0
    %1121 = vmatpush1.msra.mxu0 0.0
    %1122 = vmatprep.subr.mxu0 0.0
    %1123 = vmatpush1.msra.mxu0 0.0
    %1124 = vmatprep.subr.mxu0 0.0
    %1125 = vmatpush1.msra.mxu0 0.0
    %1126 = vmatprep.subr.mxu0 0.0
    %1127 = vmatpush1.msra.mxu0 0.0
    %1128 = vmatprep.subr.mxu0 0.0
    %1129 = vmatpush1.msra.mxu0 0.0
    %1130 = vmatprep.subr.mxu0 0.0
    %1131 = vmatpush1.msra.mxu0 0.0
    %1132 = vmatprep.subr.mxu0 0.0
    %1133 = vmatpush1.msra.mxu0 0.0
    %1134 = vmatprep.subr.mxu0 0.0
    %1135 = vmatpush1.msra.mxu0 0.0
    %1136 = vmatprep.subr.mxu0 0.0
    %1137 = vmatpush1.msra.mxu0 0.0
    %1138 = vmatprep.subr.mxu0 0.0
    %1139 = vmatpush1.msra.mxu0 0.0
    %1140 = vmatprep.subr.mxu0 0.0
    %1141 = vmatpush1.msra.mxu0 0.0
    %1142 = vmatprep.subr.mxu0 0.0
    %1143 = vmatpush1.msra.mxu0 0.0
    %1144 = vmatprep.subr.mxu0 0.0
    %1145 = vmatpush1.msra.mxu0 0.0
    %1146 = vmatprep.subr.mxu0 0.0
    %1147 = vmatpush1.msra.mxu0 0.0
    %1148 = vmatprep.subr.mxu0 0.0
    %1149 = vmatpush1.msra.mxu0 0.0
    %1150 = vmatprep.mubr.f32.mxu0 0.0
    %1151 = vmatmul.mubr.f32.gmra.mrb[0].mxu0 %v1081
    %v1152 = vpop.f32.mrb[0].mxu0
    %v1153 = vadd.f32 %v1079, %v1152
    %v1154 = vpop.f32.mrb[0].mxu0
    %1155 = vmatprep.mubr.f32.mxu0 0.0
    %1156 = vmatmul.mubr.f32.gmra.mrb[0].mxu0 %v1084
    %v1157 = vpop.f32.mrb[0].mxu0
    %v1158 = vadd.f32 %v1079, %v1157
    %v1159 = vpop.f32.mrb[0].mxu0
    %1160 = vdwg.mxu0
    %1161 = vst.msk [vmem:[#allocation2] sm:$0xff] %vm45, %v1153
    %1162 = vst.msk [vmem:[#allocation2 + $0x8] sm:$0xff] %vm45, %v1158
    // Predicated region
    $region42: #{convcap_forward.1} parent=1 // pred_check
      _
    $region43: #{convcap_forward.1} parent=1 // pred_check_branch
      %1164 = sbr.rel (0) target = $region45
    $region44: #{convcap_forward.1} parent=1 // pred_region
      %s1166 = ssub.s32 256, 256
      %1167 = vsyncadd [#allocation3], %s1166
      %s1168 = sshll.u32 [#allocation2], 4
      %s1169 = int_to_ptr.vmem [resolvable:$true] %s1168
      %1174 = dma.vmem_to_hbm [thread:$0]  %s1169, 256, %s10, [#allocation3], 128, 128, 8
    $region45: #{convcap_forward.1} parent=1 // pred_fallthru
      _
    // Predicated region
    $region46: #{convcap_forward.1} parent=1 // pred_check
      _
    $region47: #{convcap_forward.1} parent=1 // pred_check_branch
      %1176 = sbr.rel (0) target = $region49
    $region48: #{convcap_forward.1} parent=1 // pred_region
      %s1178 = ssub.s32 256, 256
      %1179 = vsyncadd [#allocation5], %s1178
      %s1180 = sshll.u32 [#allocation4], 4
      %s1181 = int_to_ptr.vmem [resolvable:$true] %s1180
      %1186 = dma.vmem_to_hbm [thread:$0]  %s1181, 256, %s11, [#allocation5], 128, 128, 8
    $region49: #{convcap_forward.1} parent=1 // pred_fallthru
      _
    // Predicated region
    $region50: #{convcap_forward.1} parent=1 // pred_check
      _
    $region51: #{convcap_forward.1} parent=1 // pred_check_branch
      %1188 = sbr.rel (0) target = $region53
    $region52: #{convcap_forward.1} parent=1 // pred_region
      %1189 = dma.done [#allocation3], 256
    $region53: #{convcap_forward.1} parent=1 // pred_fallthru
      _
    // Predicated region
    $region54: #{convcap_forward.1} parent=1 // pred_check
      _
    $region55: #{convcap_forward.1} parent=1 // pred_check_branch
      %1191 = sbr.rel (0) target = $region57
    $region56: #{convcap_forward.1} parent=1 // pred_region
      %1192 = dma.done [#allocation5], 256
    $region57: #{convcap_forward.1} parent=1 // pred_fallthru
      _
    %1193 = vsyncpa [#allocation3], 1
    %1194 = vsyncpa [#allocation5], 1

</llo_original>
